<compile_context>
chip_gen: v7x
topology: tpu7x:2x2x1
jax: 0.10.0
libtpu: 0.0.40
codegen_flags: <defaults>
</compile_context>

<pallas_src>
import functools

import jax
import jax.numpy as jnp
from jax import lax
from jax.experimental import pallas as pl
from jax.experimental.pallas import tpu as pltpu

VDD = 1.0
EPS = 1e-5


def _round_up(x, m):
    return ((x + m - 1) // m) * m


def _hw_budget():
    """(target_block_bytes, vmem_limit_bytes), generation-aware, safe fallback."""
    try:
        vmem_cap = pltpu.get_tpu_info().vmem_capacity_bytes
    except Exception:  # unknown chip / API mismatch -> assume smallest (v7x)
        vmem_cap = 64 * 1024 * 1024
    if vmem_cap >= 100 * 1024 * 1024:   # v5e / v6e: 128 MiB physical VMEM
        return 8 << 20, 64 << 20
    return 2 << 20, 32 << 20            # v7x: 64 MiB physical / 32 MiB scoped


# ---------------------------------------------------------------------------
# Fused single-kernel path (full batch per block, feature-tiled grid).
# ---------------------------------------------------------------------------
def _fused_kernel(x_ref, gamma_ref, beta_ref, o_ref, *, tc):
    # x_ref: (N, TC); gamma_ref/beta_ref: (1, Cp) resident; o_ref: (N, TC)
    off = pl.multiple_of(pl.program_id(0) * tc, 128)
    g = gamma_ref[:, pl.ds(off, tc)]
    b = beta_ref[:, pl.ds(off, tc)]

    x = x_ref[...].astype(jnp.float32)          # no-op for f32; enables bf16 I/O
    mean = jnp.mean(x, axis=0, keepdims=True)   # (1, TC)
    centered = x - mean
    var = jnp.mean(centered * centered, axis=0, keepdims=True)  # biased var
    scale = lax.rsqrt(var + EPS) * g            # fold inv_std into gamma (1, TC)
    o_ref[...] = (centered * scale + b).astype(o_ref.dtype)


def _agc_fused(xp, gamma2, beta2, tc, vmem_limit):
    n, cp = xp.shape
    grid = (cp // tc,)
    return pl.pallas_call(
        functools.partial(_fused_kernel, tc=tc),
        out_shape=jax.ShapeDtypeStruct((n, cp), xp.dtype),
        grid=grid,
        in_specs=[
            pl.BlockSpec((n, tc), lambda i: (0, i)),    # full batch, C tile i
            pl.BlockSpec((1, cp), lambda i: (0, 0)),    # gamma': resident once
            pl.BlockSpec((1, cp), lambda i: (0, 0)),    # beta' : resident once
        ],
        out_specs=pl.BlockSpec((n, tc), lambda i: (0, i)),
        compiler_params=pltpu.CompilerParams(
            dimension_semantics=("parallel",),
            vmem_limit_bytes=vmem_limit,
        ),
    )(xp, gamma2, beta2)


# ---------------------------------------------------------------------------
# Two-pass path for large batches: (1) per-feature stats with N tiled as an
# "arbitrary" reduction axis, (2) elementwise normalize.
# ---------------------------------------------------------------------------
def _stats_kernel(x_ref, gamma_ref, beta_ref, scale_ref, shift_ref,
                  sum_ref, sq_ref, *, n_total, tn):
    ni = pl.program_id(1)

    @pl.when(ni == 0)
    def _init():
        sum_ref[...] = jnp.zeros_like(sum_ref)
        sq_ref[...] = jnp.zeros_like(sq_ref)

    x = x_ref[...].astype(jnp.float32)
    if n_total % tn != 0:
        # Mask out-of-range rows of the ragged last N tile.
        row = lax.broadcasted_iota(jnp.int32, x.shape, 0)
        x = jnp.where(ni * tn + row < n_total, x, 0.0)

    sum_ref[...] += jnp.sum(x, axis=0, keepdims=True)
    sq_ref[...] += jnp.sum(x * x, axis=0, keepdims=True)

    @pl.when(ni == pl.num_programs(1) - 1)
    def _finalize():
        inv_n = jnp.float32(1.0 / n_total)
        mean = sum_ref[...] * inv_n
        var = jnp.maximum(sq_ref[...] * inv_n - mean * mean, 0.0)
        scale = lax.rsqrt(var + EPS) * gamma_ref[...]
        scale_ref[...] = scale
        shift_ref[...] = beta_ref[...] - mean * scale


def _normalize_kernel(x_ref, scale_ref, shift_ref, o_ref):
    o_ref[...] = (x_ref[...].astype(jnp.float32) * scale_ref[...]
                  + shift_ref[...]).astype(o_ref.dtype)


def _agc_two_pass(xp, gamma2, beta2, tn, tc, vmem_limit):
    n, cp = xp.shape
    nct = cp // tc
    nnt = pl.cdiv(n, tn)

    scale, shift = pl.pallas_call(
        functools.partial(_stats_kernel, n_total=n, tn=tn),
        out_shape=(jax.ShapeDtypeStruct((1, cp), jnp.float32),
                   jax.ShapeDtypeStruct((1, cp), jnp.float32)),
        grid=(nct, nnt),
        in_specs=[
            pl.BlockSpec((tn, tc), lambda ci, ni: (ni, ci)),
            pl.BlockSpec((1, tc), lambda ci, ni: (0, ci)),
            pl.BlockSpec((1, tc), lambda ci, ni: (0, ci)),
        ],
        out_specs=(pl.BlockSpec((1, tc), lambda ci, ni: (0, ci)),
                   pl.BlockSpec((1, tc), lambda ci, ni: (0, ci))),
        scratch_shapes=[pltpu.VMEM((1, tc), jnp.float32),
                        pltpu.VMEM((1, tc), jnp.float32)],
        compiler_params=pltpu.CompilerParams(
            dimension_semantics=("parallel", "arbitrary"),
            vmem_limit_bytes=vmem_limit,
        ),
    )(xp, gamma2, beta2)

    return pl.pallas_call(
        _normalize_kernel,
        out_shape=jax.ShapeDtypeStruct((n, cp), xp.dtype),
        grid=(nnt, nct),
        in_specs=[
            pl.BlockSpec((tn, tc), lambda ni, ci: (ni, ci)),
            pl.BlockSpec((1, tc), lambda ni, ci: (0, ci)),
            pl.BlockSpec((1, tc), lambda ni, ci: (0, ci)),
        ],
        out_specs=pl.BlockSpec((tn, tc), lambda ni, ci: (ni, ci)),
        compiler_params=pltpu.CompilerParams(
            dimension_semantics=("parallel", "parallel"),
            vmem_limit_bytes=vmem_limit,
        ),
    )(xp, scale, shift)


# ---------------------------------------------------------------------------
# Public wrapper.
# ---------------------------------------------------------------------------
def agc_forward(x, gamma, beta, vdd=VDD, *, force_pallas=False,
                _force_two_pass=False, _force_tn=None):
    """AGC forward. x: (N, C); gamma/beta: (C,) BatchNorm affine params."""
    n, c = x.shape
    itemsize = x.dtype.itemsize

    # Fold (y + 1) * Vdd/2 into the BN affine:
    #   ((xn*gamma + beta) + 1) * Vdd/2 == xn*(gamma*Vdd/2) + (beta+1)*Vdd/2
    gamma2 = (gamma.astype(jnp.float32) * (vdd / 2.0)).reshape(1, c)
    beta2 = ((beta.astype(jnp.float32) + 1.0) * (vdd / 2.0)).reshape(1, c)

    # Tiny problems: a standalone Pallas kernel cannot win; let XLA fuse it.
    if (not force_pallas and not _force_two_pass
            and n * c * itemsize < (64 << 10)):
        xf = x.astype(jnp.float32)
        mean = jnp.mean(xf, axis=0, keepdims=True)
        centered = xf - mean
        var = jnp.mean(centered * centered, axis=0, keepdims=True)
        out = centered * (lax.rsqrt(var + EPS) * gamma2) + beta2
        return out.astype(x.dtype)

    target_block_bytes, vmem_limit = _hw_budget()
    c128 = _round_up(c, 128)

    use_two_pass = _force_two_pass or (n * 128 * itemsize > 2 * target_block_bytes)

    if not use_two_pass:
        max_tc = max(128,
                     (target_block_bytes // max(1, n * itemsize)) // 128 * 128)
        tc = min(c128, max_tc)
    else:
        tc = min(c128, 512)

    # v7x: keep >=2 feature tiles when C allows so both TensorCores get work
    # (harmless extra grid steps on 1-TC chips).
    if c128 >= 256:
        tc = min(tc, max(128, (c128 // 2) // 128 * 128))

    # Pad C so every block (and every store) is lane-dense and grid is exact.
    cp = _round_up(c, tc)
    if cp != c:
        x_in = jnp.pad(x, ((0, 0), (0, cp - c)))
        gamma2 = jnp.pad(gamma2, ((0, 0), (0, cp - c)))
        beta2 = jnp.pad(beta2, ((0, 0), (0, cp - c)))
    else:
        x_in = x

    if use_two_pass:
        if _force_tn is not None:
            tn = _force_tn
        else:
            tn = max(8, (target_block_bytes // max(1, tc * itemsize)) // 8 * 8)
        tn = min(tn, _round_up(n, 8))
        if tn >= n:
            tn = n
        out = _agc_two_pass(x_in, gamma2, beta2, tn, tc, vmem_limit)
    else:
        out = _agc_fused(x_in, gamma2, beta2, tc, vmem_limit)

    return out[:, :c] if cp != c else out


if __name__ == "__main__":
    key = jax.random.PRNGKey(0)
    kx, kg, kb, kx2 = jax.random.split(key, 4)

    def reference(x, gamma, beta, vdd=VDD):
        mean = jnp.mean(x, axis=0, keepdims=True)
        var = jnp.mean((x - mean) ** 2, axis=0, keepdims=True)
        y = (x - mean) / jnp.sqrt(var + EPS) * gamma[None, :] + beta[None, :]
        return (y + 1.0) * (vdd / 2.0)

    # Small shapes consistent with the module: batch=8, num_of_adcs=32.
    N, C = 8, 32
    x = jax.random.normal(kx, (N, C), dtype=jnp.float32)
    gamma = 1.0 + 0.1 * jax.random.normal(kg, (C,), dtype=jnp.float32)
    beta = 0.1 * jax.random.normal(kb, (C,), dtype=jnp.float32)

    # Fused Pallas path (forced; the default dispatch would use the tiny-size
    # jnp fallback for a problem this small).
    out = agc_forward(x, gamma, beta, force_pallas=True)
    jax.block_until_ready(out)
    ref = reference(x, gamma, beta)
    assert out.shape == x.shape
    assert jnp.allclose(out, ref, atol=1e-5, rtol=1e-5), "fused path mismatch"

    # Default dispatch (tiny-problem jnp fallback) must match too.
    out_fb = agc_forward(x, gamma, beta)
    assert jnp.allclose(out_fb, ref, atol=1e-5, rtol=1e-5), "fallback mismatch"

    # Exercise the N-tiled two-pass path (used automatically for large batches)
    # at a small shape, including a ragged N tile and padded C tiles.
    N2, C2 = 20, 160
    x2 = jax.random.normal(kx2, (N2, C2), dtype=jnp.float32)
    gamma_b = 1.0 + 0.1 * jax.random.normal(kg, (C2,), dtype=jnp.float32)
    beta_b = 0.1 * jax.random.normal(kb, (C2,), dtype=jnp.float32)
    out2 = agc_forward(x2, gamma_b, beta_b, _force_two_pass=True, _force_tn=8)
    jax.block_until_ready(out2)
    ref2 = reference(x2, gamma_b, beta_b)
    assert jnp.allclose(out2, ref2, atol=1e-4, rtol=1e-4), "two-pass path mismatch"

    print("KERNEL_OK")
</pallas_src>

<mosaic_0001>
module attributes {stable_mosaic.version = 11 : i64} {
  func.func @_fused_kernel(%arg0: i32, %arg1: memref<8x128xf32, #tpu.memory_space<vmem>>, %arg2: memref<1x128xf32, #tpu.memory_space<vmem>>, %arg3: memref<1x128xf32, #tpu.memory_space<vmem>>, %arg4: memref<8x128xf32, #tpu.memory_space<vmem>>) attributes {dimension_semantics = [#tpu.dimension_semantics<parallel>], iteration_bounds = array<i64: 1>, scalar_prefetch = 0 : i64, scratch_operands = 0 : i64, tpu.core_type = #tpu.core_type<tc>, window_params = [{transform_indices = @transform_0, window_bounds = array<i64: 8, 128>}, {pipeline_mode = #tpu.pipeline_mode<synchronous>, transform_indices = @transform_1, window_bounds = array<i64: 1, 128>}, {pipeline_mode = #tpu.pipeline_mode<synchronous>, transform_indices = @transform_2, window_bounds = array<i64: 1, 128>}, {transform_indices = @transform_3, window_bounds = array<i64: 8, 128>}]} {
    %c128_i32 = arith.constant 128 : i32
    %0 = arith.muli %arg0, %c128_i32 : i32
    %1 = tpu.assume_multiple %0, 128 : i32
    %c0 = arith.constant 0 : index
    %2 = arith.index_cast %1 : i32 to index
    %3 = vector.load %arg2[%c0, %2] : memref<1x128xf32, #tpu.memory_space<vmem>>, vector<1x128xf32>
    %c0_0 = arith.constant 0 : index
    %4 = arith.index_cast %1 : i32 to index
    %5 = vector.load %arg3[%c0_0, %4] : memref<1x128xf32, #tpu.memory_space<vmem>>, vector<1x128xf32>
    %c0_1 = arith.constant 0 : index
    %c0_2 = arith.constant 0 : index
    %6 = vector.load %arg1[%c0_1, %c0_2] : memref<8x128xf32, #tpu.memory_space<vmem>>, vector<8x128xf32>
    %cst = arith.constant dense<0.000000e+00> : vector<128xf32>
    %7 = vector.multi_reduction <add>, %6, %cst [0] : vector<8x128xf32> to vector<128xf32>
    %8 = vector.shape_cast %7 : vector<128xf32> to vector<1x128xf32>
    %cst_3 = arith.constant 8.000000e+00 : f32
    %9 = vector.broadcast %cst_3 : f32 to vector<1x128xf32>
    %10 = arith.divf %8, %9 : vector<1x128xf32>
    %11 = vector.broadcast %10 : vector<1x128xf32> to vector<8x128xf32>
    %12 = arith.subf %6, %11 : vector<8x128xf32>
    %13 = arith.mulf %12, %12 : vector<8x128xf32>
    %cst_4 = arith.constant dense<0.000000e+00> : vector<128xf32>
    %14 = vector.multi_reduction <add>, %13, %cst_4 [0] : vector<8x128xf32> to vector<128xf32>
    %15 = vector.shape_cast %14 : vector<128xf32> to vector<1x128xf32>
    %cst_5 = arith.constant 8.000000e+00 : f32
    %16 = vector.broadcast %cst_5 : f32 to vector<1x128xf32>
    %17 = arith.divf %15, %16 : vector<1x128xf32>
    %cst_6 = arith.constant 9.99999974E-6 : f32
    %18 = vector.broadcast %cst_6 : f32 to vector<1x128xf32>
    %19 = arith.addf %17, %18 : vector<1x128xf32>
    %20 = math.rsqrt %19 : vector<1x128xf32>
    %21 = arith.mulf %20, %3 : vector<1x128xf32>
    %22 = vector.broadcast %21 : vector<1x128xf32> to vector<8x128xf32>
    %23 = arith.mulf %12, %22 : vector<8x128xf32>
    %24 = vector.broadcast %5 : vector<1x128xf32> to vector<8x128xf32>
    %25 = arith.addf %23, %24 : vector<8x128xf32>
    %c0_7 = arith.constant 0 : index
    %c0_8 = arith.constant 0 : index
    %26 = vector.load %arg4[%c0_7, %c0_8] : memref<8x128xf32, #tpu.memory_space<vmem>>, vector<8x128xf32>
    tpu.vector_store %arg4[%c0_7, %c0_8], %25 {strides = array<i32>} : memref<8x128xf32, #tpu.memory_space<vmem>>, vector<8x128xf32>,
    return
  }
  func.func @transform_0(%arg0: i32) -> (i32, i32) {
    %c0_i32 = arith.constant 0 : i32
    %c0_i32_0 = arith.constant 0 : i32
    return %c0_i32, %arg0 : i32, i32
  }
  func.func @transform_1(%arg0: i32) -> (i32, i32) {
    %c0_i32 = arith.constant 0 : i32
    %c0_i32_0 = arith.constant 0 : i32
    %c0_i32_1 = arith.constant 0 : i32
    return %c0_i32, %c0_i32_0 : i32, i32
  }
  func.func @transform_2(%arg0: i32) -> (i32, i32) {
    %c0_i32 = arith.constant 0 : i32
    %c0_i32_0 = arith.constant 0 : i32
    %c0_i32_1 = arith.constant 0 : i32
    return %c0_i32, %c0_i32_0 : i32, i32
  }
  func.func @transform_3(%arg0: i32) -> (i32, i32) {
    %c0_i32 = arith.constant 0 : i32
    %c0_i32_0 = arith.constant 0 : i32
    return %c0_i32, %arg0 : i32, i32
  }
}

</mosaic_0001>

<llo_original>
// kernel: tpu_custom_call.1
$region0: #{tpu_custom_call.1}
  #allocation0 [shape = 'u32[]', space=smem, size = 0x4, offset = 0x4, fixed_abs, tag = 'smem constant byte address 0x4 - core index']
  #allocation1 [shape = 'u32[144,128]{1,0:T(1,128)}', space=vmem, size = 0x12000, scoped, tag = 'internal scratch']
  %s0 = inlined_call_operand.hbm [shape: f32[8,128], index: 0, kind: input, shape index: {}]
  %s1 = inlined_call_operand.vmem [shape: f32[1,128], index: 1, kind: input, shape index: {}]
  %s2 = inlined_call_operand.vmem [shape: f32[1,128], index: 2, kind: input, shape index: {}]
  %s3 = inlined_call_operand.hbm [shape: f32[8,128], index: 3, kind: output, shape index: {}]
  %s4 = sld [smem:[#allocation0]]
  $region26: #{tpu_custom_call.1} parent=0
    _
  %s6 = ssub.s32 1, %s4
  %s7 = scalar_select 0, %s6, %s4
  $region1: #{tpu_custom_call.1} parent=0
    #allocation2 [shape = 'u8[4096]{0}', space=vmem, size = 0x1000, scoped, tag = 'input window, operand 0, single buffered']
    #allocation3 [shape = 's32[1]{0}', space=sflag, size = 0x4, scoped, tag = 'scoped memory for tpu_custom_call.1']
    #allocation4 [shape = 's32[1]{0}', space=sflag, size = 0x4, scoped, tag = 'scoped memory for tpu_custom_call.1']
    #allocation5 [shape = 'u8[4096]{0}', space=vmem, size = 0x1000, scoped, tag = 'output window, operand 0, single buffered']
    %8 = vsyncpa [#allocation3], 0
    %9 = vsyncpa [#allocation4], 0
    // Predicated region
    $region2: #{tpu_custom_call.1} parent=1 // pred_check
      _
    $region3: #{tpu_custom_call.1} parent=1 // pred_check_branch
      %11 = sbr.rel (0) target = $region5
    $region4: #{tpu_custom_call.1} parent=1 // pred_region
      %s13 = ssub.s32 128, 128
      %14 = vsyncadd [#allocation3], %s13
      %s16 = sshll.u32 [#allocation2], 4
      %s17 = int_to_ptr.vmem [resolvable:$true] %s16
      %19 = dma.hbm_to_vmem [thread:$0]  %s0, 128, %s17, [#allocation3]
    $region5: #{tpu_custom_call.1} parent=1 // pred_fallthru
      _
    // Predicated region
    $region6: #{tpu_custom_call.1} parent=1 // pred_check
      _
    $region7: #{tpu_custom_call.1} parent=1 // pred_check_branch
      %21 = sbr.rel (0) target = $region9
    $region8: #{tpu_custom_call.1} parent=1 // pred_region
      _
    $region9: #{tpu_custom_call.1} parent=1 // pred_fallthru
      _
    // Predicated region
    $region10: #{tpu_custom_call.1} parent=1 // pred_check
      _
    $region11: #{tpu_custom_call.1} parent=1 // pred_check_branch
      %23 = sbr.rel (0) target = $region13
    $region12: #{tpu_custom_call.1} parent=1 // pred_region
      _
    $region13: #{tpu_custom_call.1} parent=1 // pred_fallthru
      _
    // Predicated region
    $region14: #{tpu_custom_call.1} parent=1 // pred_check
      _
    $region15: #{tpu_custom_call.1} parent=1 // pred_check_branch
      %25 = sbr.rel (0) target = $region17
    $region16: #{tpu_custom_call.1} parent=1 // pred_region
      %26 = dma.done [#allocation3], 128
    $region17: #{tpu_custom_call.1} parent=1 // pred_fallthru
      _
    %s27 = smul.u32 0, 128
    %s28 = sshra.s32 %s27, 7
    %s29 = sand.u32 %s27, 127
    %s30 = scalar_lea.vmem %s1, %s28
    %v31 = vld [vmem:[%s30] sm:$0x1]
    %s32 = scalar_lea.vmem %s2, %s28
    %v33 = vld [vmem:[%s32] sm:$0x1]
    %v34 = vld [vmem:[#allocation2] sm:$0xff]
    %v35 = vrot.slane %v34, 4
    %v36 = vadd.f32 %v34, %v35
    %v37 = vrot.slane %v36, 2
    %v38 = vadd.f32 %v36, %v37
    %v39 = vrot.slane %v38, 1
    %v40 = vadd.f32 %v38, %v39
    %v41 = vrcp.pop 8.0
    %v42 = vmul.f32 %v40, %v41
    %v43 = vsub.f32 %v34, %v42
    %v44 = vmul.f32 %v43, %v43
    %v45 = vrot.slane %v44, 4
    %v46 = vadd.f32 %v44, %v45
    %v47 = vrot.slane %v46, 2
    %v48 = vadd.f32 %v46, %v47
    %v49 = vrot.slane %v48, 1
    %v50 = vadd.f32 %v48, %v49
    %v51 = vmul.f32 %v50, %v41
    %v52 = vadd.f32 %v51, 1e-05
    %v53 = vrsqrt.pop %v52
    %v54 = vmul.f32 %v53, %v31
    %v55 = vlaneseq
    %v56 = vshrl.u32 %v55, 7
    %v57 = vsub.s32 0, %v56
    %v58 = vrot.slane %v54, %v57
    %v59 = vmul.f32 %v43, %v58
    %v61 = vlaneseq
    %v62 = vshrl.u32 %v61, 7
    %v63 = vsub.s32 0, %v62
    %v64 = vrot.slane %v33, %v63
    %v66 = vadd.f32 %v59, %v64
    %67 = vst [vmem:[#allocation5] sm:$0xff] %v66
    // Predicated region
    $region18: #{tpu_custom_call.1} parent=1 // pred_check
      _
    $region19: #{tpu_custom_call.1} parent=1 // pred_check_branch
      %69 = sbr.rel (0) target = $region21
    $region20: #{tpu_custom_call.1} parent=1 // pred_region
      %s71 = ssub.s32 128, 128
      %72 = vsyncadd [#allocation4], %s71
      %s74 = sshll.u32 [#allocation5], 4
      %s75 = int_to_ptr.vmem [resolvable:$true] %s74
      %77 = dma.vmem_to_hbm [thread:$0]  %s75, 128, %s3, [#allocation4]
    $region21: #{tpu_custom_call.1} parent=1 // pred_fallthru
      _
    // Predicated region
    $region22: #{tpu_custom_call.1} parent=1 // pred_check
      _
    $region23: #{tpu_custom_call.1} parent=1 // pred_check_branch
      %79 = sbr.rel (0) target = $region25
    $region24: #{tpu_custom_call.1} parent=1 // pred_region
      %80 = dma.done [#allocation4], 128
    $region25: #{tpu_custom_call.1} parent=1 // pred_fallthru
      _
    %81 = vsyncpa [#allocation3], 1
    %82 = vsyncpa [#allocation4], 1

</llo_original>
